<compile_context>
chip_gen: v6e
topology: v6e:2x2x1
jax: 0.10.0
libtpu: 0.0.40
codegen_flags: <defaults>
</compile_context>

<pallas_src>
import functools

import jax
import jax.numpy as jnp
from jax import lax
from jax.experimental import pallas as pl
from jax.experimental.pallas import tpu as pltpu


def _hashnet_loss_kernel(u_ref, y_ref, ut_ref, yt_ref, out_ref, acc_ref, *,
                         alpha, num_train):
    c = pl.program_id(0)           # chunk (parallel axis, megacore on v7x)
    j = pl.program_id(1)           # tile within chunk (sequential reduction axis)
    nj = pl.num_programs(1)

    @pl.when(j == 0)
    def _():
        acc_ref[...] = jnp.zeros_like(acc_ref)

    u = u_ref[...]                                      # (B, bit)          f32
    y = y_ref[...]                                      # (B, n_class)      f32
    ut = ut_ref[...]                                    # (bit, tile_n)     f32 (f16-rounded)
    yt = yt_ref[...]                                    # (n_class, tile_n) f32
    tile_n = ut.shape[1]

    # Banks stored transposed -> no in-kernel transpose, MXU-friendly contraction.
    dp = alpha * jnp.dot(u, ut, preferred_element_type=jnp.float32)        # (B, tile_n)
    sim_raw = jnp.dot(y, yt, preferred_element_type=jnp.float32) > 0.0     # (B, tile_n)

    # Mask columns past num_train (tail tile / phantom tiles of the padded grid).
    tile_start = (c * nj + j) * tile_n
    col = tile_start + lax.broadcasted_iota(jnp.int32, dp.shape, 1)
    valid = col < num_train

    dp = jnp.where(valid, dp, 0.0)
    sim = jnp.where(jnp.logical_and(valid, sim_raw), 1.0, 0.0)
    validf = valid.astype(jnp.float32)

    # Stable softplus form, identical to the PyTorch expression (f32 VPU/EUP math).
    exp_loss = (jnp.log(1.0 + jnp.exp(-jnp.abs(dp)))
                + jnp.maximum(dp, 0.0) - sim * dp)

    s_tot = jnp.sum(exp_loss * validf, keepdims=True)   # (1, 1) total loss sum
    s_pos = jnp.sum(exp_loss * sim, keepdims=True)      # (1, 1) positive loss sum
    s_s1 = jnp.sum(sim, keepdims=True)                  # (1, 1) S1 count

    # Accumulate the three partial scalars into lanes {0,1,2} of a resident vreg.
    lane = lax.broadcasted_iota(jnp.int32, acc_ref.shape, 1)
    acc_ref[...] += (jnp.where(lane == 0, s_tot, 0.0)
                     + jnp.where(lane == 1, s_pos, 0.0)
                     + jnp.where(lane == 2, s_s1, 0.0))

    # Single full-vreg store of this chunk's partials at the end of its reduction.
    @pl.when(j == nj - 1)
    def _():
        out_ref[0] = acc_ref[...]


def hashnet_loss(u, y, ind, U_T, Y_T, *, alpha, tile_n=512, num_chunks=2):
    """HashNet loss step.

    u:   (B, bit) f32      current-batch hash codes.
    y:   (B, n_class) f32  current-batch labels.
    ind: (B,) int32        row indices into the training banks.
    U_T: (bit, num_train) f32     transposed code bank (values f16-rounded).
    Y_T: (n_class, num_train) f32 transposed label bank.
    Returns (loss, new_U_T, new_Y_T).  Wrap in jax.jit(..., donate_argnums=(3, 4))
    so the bank update is an in-place row scatter instead of a full-bank HBM copy.
    """
    u = u.astype(jnp.float32)
    y = y.astype(jnp.float32)

    # self.U[ind] = u.half() ; self.Y[ind] = y.float()   (banks kept transposed)
    U_T = U_T.at[:, ind].set(u.T.astype(jnp.float16).astype(jnp.float32))
    Y_T = Y_T.at[:, ind].set(y.T)

    B, bit = u.shape
    n_class = y.shape[1]
    num_train = U_T.shape[1]

    # Lane-dense tiling: tile_n must be a multiple of 128 unless it spans the bank.
    if tile_n >= num_train:
        tile_n = num_train
    else:
        tile_n = max(128, (tile_n // 128) * 128)

    total_tiles = pl.cdiv(num_train, tile_n)
    num_chunks = max(1, min(num_chunks, total_tiles))
    chunk_tiles = pl.cdiv(total_tiles, num_chunks)
    last_tile = total_tiles - 1

    def bank_map(c, j):
        # Clamp phantom tiles of the padded (num_chunks * chunk_tiles) grid; their
        # contribution is masked out inside the kernel anyway.
        return (0, jnp.minimum(c * chunk_tiles + j, last_tile))

    partials = pl.pallas_call(
        functools.partial(_hashnet_loss_kernel,
                          alpha=float(alpha), num_train=num_train),
        out_shape=jax.ShapeDtypeStruct((num_chunks, 8, 128), jnp.float32),
        grid_spec=pltpu.PrefetchScalarGridSpec(
            num_scalar_prefetch=0,
            grid=(num_chunks, chunk_tiles),
            in_specs=[
                pl.BlockSpec((B, bit), lambda c, j: (0, 0)),
                pl.BlockSpec((B, n_class), lambda c, j: (0, 0)),
                pl.BlockSpec((bit, tile_n), bank_map),
                pl.BlockSpec((n_class, tile_n), bank_map),
            ],
            out_specs=pl.BlockSpec((1, 8, 128), lambda c, j: (c, 0, 0)),
            scratch_shapes=[pltpu.VMEM((8, 128), jnp.float32)],
        ),
        compiler_params=pltpu.CompilerParams(
            dimension_semantics=("parallel", "arbitrary")),
    )(u, y, U_T, Y_T)

    sums = jnp.sum(partials[:, 0, :], axis=0)           # (128,)
    sum_total, sum_pos, s1 = sums[0], sums[1], sums[2]
    sum_neg = sum_total - sum_pos
    s0 = jnp.float32(B * num_train) - s1

    # loss = sum_pos*(S/S1)/S + sum_neg*(S/S0)/S = sum_pos/S1 + sum_neg/S0
    # (empty positive/negative set contributes 0, matching the masked indexing).
    pos_term = jnp.where(s1 > 0, sum_pos / jnp.where(s1 > 0, s1, 1.0), 0.0)
    neg_term = jnp.where(s0 > 0, sum_neg / jnp.where(s0 > 0, s0, 1.0), 0.0)
    return pos_term + neg_term, U_T, Y_T


def _reference_loss(u, y, ind, U_state, Y_state, alpha):
    """Pure-JAX reference mirroring the PyTorch forward exactly (untransposed banks)."""
    U_state = U_state.at[ind].set(u.astype(U_state.dtype))     # f16 storage
    Y_state = Y_state.at[ind].set(y.astype(Y_state.dtype))     # f32 storage
    U_f = U_state.astype(jnp.float32)
    Y_f = Y_state.astype(jnp.float32)
    sim = (y @ Y_f.T > 0).astype(jnp.float32)
    dp = alpha * (u @ U_f.T)
    exp_loss = jnp.log(1.0 + jnp.exp(-jnp.abs(dp))) + jnp.maximum(dp, 0.0) - sim * dp
    S1 = jnp.sum(sim)
    S0 = jnp.float32(sim.size) - S1
    S = S0 + S1
    scaled = exp_loss * sim * (S / S1) + exp_loss * (1.0 - sim) * (S / S0)
    return jnp.sum(scaled) / S


if __name__ == "__main__":
    key = jax.random.PRNGKey(0)
    k_u, k_cls, k_ind, k_seedu, k_seedy = jax.random.split(key, 5)

    batch = 8
    bit = 32           # hash code length
    n_class = 16
    num_train = 1000   # deliberately NOT a multiple of the tile to exercise masking
    alpha = 0.1

    # Module state in reference layout (matches torch: U half, Y float, zero-init).
    U0 = jnp.zeros((num_train, bit), dtype=jnp.float16)
    Y0 = jnp.zeros((num_train, n_class), dtype=jnp.float32)
    # Seed part of the banks so the loss sees non-trivial stored rows.
    U0 = U0.at[:128].set(
        jnp.sign(jax.random.normal(k_seedu, (128, bit))).astype(jnp.float16))
    Y0 = Y0.at[:128].set(jax.nn.one_hot(
        jax.random.randint(k_seedy, (128,), 0, n_class), n_class, dtype=jnp.float32))

    # Current minibatch.
    u = jnp.tanh(jax.random.normal(k_u, (batch, bit), dtype=jnp.float32))
    y = jax.nn.one_hot(jax.random.randint(k_cls, (batch,), 0, n_class), n_class,
                       dtype=jnp.float32)
    ind = jax.random.permutation(k_ind, num_train)[:batch].astype(jnp.int32)

    # Reference first (uses its own bank copies, so donating the kernel banks is safe).
    ref = jax.block_until_ready(_reference_loss(u, y, ind, U0, Y0, alpha))

    # Kernel-layout state: transposed banks in compute dtype (U values f16-rounded).
    U_T0 = U0.astype(jnp.float32).T          # (bit, num_train)
    Y_T0 = Y0.T                              # (n_class, num_train)

    step = jax.jit(
        functools.partial(hashnet_loss, alpha=alpha, tile_n=256, num_chunks=2),
        donate_argnums=(3, 4))               # in-place bank scatter
    loss, U_T1, Y_T1 = step(u, y, ind, U_T0, Y_T0)
    loss = jax.block_until_ready(loss)

    assert jnp.allclose(loss, ref, rtol=1e-3, atol=1e-5), (loss, ref)
    print("KERNEL_OK")
</pallas_src>

<mosaic_0001>
module attributes {stable_mosaic.version = 11 : i64} {
  func.func @_hashnet_loss_kernel(%arg0: i32, %arg1: i32, %arg2: memref<8x32xf32, #tpu.memory_space<vmem>>, %arg3: memref<8x16xf32, #tpu.memory_space<vmem>>, %arg4: memref<32x256xf32, #tpu.memory_space<vmem>>, %arg5: memref<16x256xf32, #tpu.memory_space<vmem>>, %arg6: memref<1x8x128xf32, #tpu.memory_space<vmem>>, %arg7: memref<8x128xf32, #tpu.memory_space<vmem>>) attributes {dimension_semantics = [#tpu.dimension_semantics<parallel>, #tpu.dimension_semantics<arbitrary>], iteration_bounds = array<i64: 2, 2>, scalar_prefetch = 0 : i64, scratch_operands = 1 : i64, tpu.core_type = #tpu.core_type<tc>, window_params = [{pipeline_mode = #tpu.pipeline_mode<synchronous>, transform_indices = @transform_0, window_bounds = array<i64: 8, 32>}, {pipeline_mode = #tpu.pipeline_mode<synchronous>, transform_indices = @transform_1, window_bounds = array<i64: 8, 16>}, {transform_indices = @transform_2, window_bounds = array<i64: 32, 256>}, {transform_indices = @transform_3, window_bounds = array<i64: 16, 256>}, {transform_indices = @transform_4, window_bounds = array<i64: 1, 8, 128>}]} {
    %c0_i32 = arith.constant 0 : i32
    %0 = arith.cmpi eq, %arg1, %c0_i32 : i32
    %1 = arith.extui %0 : i1 to i32
    %c0_i32_0 = arith.constant 0 : i32
    %2 = arith.cmpi ne, %1, %c0_i32_0 : i32
    scf.if %2 {
      %cst_31 = arith.constant 0.000000e+00 : f32
      %85 = vector.broadcast %cst_31 : f32 to vector<8x128xf32>
      %c0_32 = arith.constant 0 : index
      %c0_33 = arith.constant 0 : index
      %86 = vector.load %arg7[%c0_32, %c0_33] : memref<8x128xf32, #tpu.memory_space<vmem>>, vector<8x128xf32>
      tpu.vector_store %arg7[%c0_32, %c0_33], %85 {strides = array<i32>} : memref<8x128xf32, #tpu.memory_space<vmem>>, vector<8x128xf32>,
    } else {
    }
    %c0 = arith.constant 0 : index
    %c0_1 = arith.constant 0 : index
    %3 = vector.load %arg2[%c0, %c0_1] : memref<8x32xf32, #tpu.memory_space<vmem>>, vector<8x32xf32>
    %c0_2 = arith.constant 0 : index
    %c0_3 = arith.constant 0 : index
    %4 = vector.load %arg3[%c0_2, %c0_3] : memref<8x16xf32, #tpu.memory_space<vmem>>, vector<8x16xf32>
    %c0_4 = arith.constant 0 : index
    %c0_5 = arith.constant 0 : index
    %5 = vector.load %arg4[%c0_4, %c0_5] : memref<32x256xf32, #tpu.memory_space<vmem>>, vector<32x256xf32>
    %c0_6 = arith.constant 0 : index
    %c0_7 = arith.constant 0 : index
    %6 = vector.load %arg5[%c0_6, %c0_7] : memref<16x256xf32, #tpu.memory_space<vmem>>, vector<16x256xf32>
    %cst = arith.constant dense<0.000000e+00> : vector<8x256xf32>
    %7 = tpu.matmul %3, %5, %cst {dimension_numbers = #tpu.dot_dimension_numbers<[1], [0], [0], [1], [0, 0, 1, 1], [], []>} : vector<8x32xf32>, vector<32x256xf32>, vector<8x256xf32> -> vector<8x256xf32>
    %cst_8 = arith.constant 1.000000e-01 : f32
    %8 = vector.broadcast %cst_8 : f32 to vector<8x256xf32>
    %9 = arith.mulf %8, %7 : vector<8x256xf32>
    %cst_9 = arith.constant dense<0.000000e+00> : vector<8x256xf32>
    %10 = tpu.matmul %4, %6, %cst_9 {dimension_numbers = #tpu.dot_dimension_numbers<[1], [0], [0], [1], [0, 0, 1, 1], [], []>} : vector<8x16xf32>, vector<16x256xf32>, vector<8x256xf32> -> vector<8x256xf32>
    %cst_10 = arith.constant 0.000000e+00 : f32
    %11 = vector.broadcast %cst_10 : f32 to vector<8x256xf32>
    %12 = arith.cmpf ogt, %10, %11 : vector<8x256xf32>
    %c2_i32 = arith.constant 2 : i32
    %13 = arith.muli %arg0, %c2_i32 : i32
    %14 = arith.addi %13, %arg1 : i32
    %c256_i32 = arith.constant 256 : i32
    %15 = arith.muli %14, %c256_i32 : i32
    %16 = tpu.iota {dimensions = array<i32: 1>} : vector<8x256xi32>
    %17 = vector.broadcast %15 : i32 to vector<8x256xi32>
    %18 = arith.addi %17, %16 : vector<8x256xi32>
    %c1000_i32 = arith.constant 1000 : i32
    %19 = vector.broadcast %c1000_i32 : i32 to vector<8x256xi32>
    %20 = arith.cmpi slt, %18, %19 : vector<8x256xi32>
    %cst_11 = arith.constant 0.000000e+00 : f32
    %21 = vector.broadcast %cst_11 : f32 to vector<8x256xf32>
    %22 = arith.select %20, %9, %21 : vector<8x256xi1>, vector<8x256xf32>
    %23 = arith.andi %20, %12 : vector<8x256xi1>
    %cst_12 = arith.constant 1.000000e+00 : f32
    %cst_13 = arith.constant 0.000000e+00 : f32
    %24 = vector.broadcast %cst_12 : f32 to vector<8x256xf32>
    %25 = vector.broadcast %cst_13 : f32 to vector<8x256xf32>
    %26 = arith.select %23, %24, %25 : vector<8x256xi1>, vector<8x256xf32>
    %27 = arith.extui %20 : vector<8x256xi1> to vector<8x256xi32>
    %28 = arith.sitofp %27 : vector<8x256xi32> to vector<8x256xf32>
    %29 = math.absf %22 : vector<8x256xf32>
    %cst_14 = arith.constant 0.000000e+00 : f32
    %30 = vector.broadcast %cst_14 : f32 to vector<8x256xf32>
    %31 = arith.subf %30, %29 : vector<8x256xf32>
    %32 = math.exp %31 : vector<8x256xf32>
    %cst_15 = arith.constant 1.000000e+00 : f32
    %33 = vector.broadcast %cst_15 : f32 to vector<8x256xf32>
    %34 = arith.addf %33, %32 : vector<8x256xf32>
    %35 = math.log %34 : vector<8x256xf32>
    %cst_16 = arith.constant 0.000000e+00 : f32
    %36 = vector.broadcast %cst_16 : f32 to vector<8x256xf32>
    %37 = arith.maximumf %22, %36 : vector<8x256xf32>
    %38 = arith.addf %35, %37 : vector<8x256xf32>
    %39 = arith.mulf %26, %22 : vector<8x256xf32>
    %40 = arith.subf %38, %39 : vector<8x256xf32>
    %41 = arith.mulf %40, %28 : vector<8x256xf32>
    %42 = vector.shape_cast %41 : vector<8x256xf32> to vector<1x8x256xf32>
    %cst_17 = arith.constant dense<0.000000e+00> : vector<1xf32>
    %43 = vector.multi_reduction <add>, %42, %cst_17 [1, 2] : vector<1x8x256xf32> to vector<1xf32>
    %44 = vector.shape_cast %43 : vector<1xf32> to vector<1x1x1xf32>
    %45 = vector.extract %44[0, 0, 0] : f32 from vector<1x1x1xf32>
    %46 = vector.broadcast %45 : f32 to vector<1x1xf32>
    %47 = arith.mulf %40, %26 : vector<8x256xf32>
    %48 = vector.shape_cast %47 : vector<8x256xf32> to vector<1x8x256xf32>
    %cst_18 = arith.constant dense<0.000000e+00> : vector<1xf32>
    %49 = vector.multi_reduction <add>, %48, %cst_18 [1, 2] : vector<1x8x256xf32> to vector<1xf32>
    %50 = vector.shape_cast %49 : vector<1xf32> to vector<1x1x1xf32>
    %51 = vector.extract %50[0, 0, 0] : f32 from vector<1x1x1xf32>
    %52 = vector.broadcast %51 : f32 to vector<1x1xf32>
    %53 = vector.shape_cast %26 : vector<8x256xf32> to vector<1x8x256xf32>
    %cst_19 = arith.constant dense<0.000000e+00> : vector<1xf32>
    %54 = vector.multi_reduction <add>, %53, %cst_19 [1, 2] : vector<1x8x256xf32> to vector<1xf32>
    %55 = vector.shape_cast %54 : vector<1xf32> to vector<1x1x1xf32>
    %56 = vector.extract %55[0, 0, 0] : f32 from vector<1x1x1xf32>
    %57 = vector.broadcast %56 : f32 to vector<1x1xf32>
    %58 = tpu.iota {dimensions = array<i32: 1>} : vector<8x128xi32>
    %c0_20 = arith.constant 0 : index
    %c0_21 = arith.constant 0 : index
    %59 = vector.load %arg7[%c0_20, %c0_21] : memref<8x128xf32, #tpu.memory_space<vmem>>, vector<8x128xf32>
    %c0_i32_22 = arith.constant 0 : i32
    %60 = vector.broadcast %c0_i32_22 : i32 to vector<8x128xi32>
    %61 = arith.cmpi eq, %58, %60 : vector<8x128xi32>
    %cst_23 = arith.constant 0.000000e+00 : f32
    %62 = vector.shape_cast %46 : vector<1x1xf32> to vector<1x1xf32>
    %63 = vector.broadcast %62 : vector<1x1xf32> to vector<8x128xf32>
    %64 = vector.broadcast %cst_23 : f32 to vector<8x128xf32>
    %65 = arith.select %61, %63, %64 : vector<8x128xi1>, vector<8x128xf32>
    %c1_i32 = arith.constant 1 : i32
    %66 = vector.broadcast %c1_i32 : i32 to vector<8x128xi32>
    %67 = arith.cmpi eq, %58, %66 : vector<8x128xi32>
    %cst_24 = arith.constant 0.000000e+00 : f32
    %68 = vector.shape_cast %52 : vector<1x1xf32> to vector<1x1xf32>
    %69 = vector.broadcast %68 : vector<1x1xf32> to vector<8x128xf32>
    %70 = vector.broadcast %cst_24 : f32 to vector<8x128xf32>
    %71 = arith.select %67, %69, %70 : vector<8x128xi1>, vector<8x128xf32>
    %72 = arith.addf %65, %71 : vector<8x128xf32>
    %c2_i32_25 = arith.constant 2 : i32
    %73 = vector.broadcast %c2_i32_25 : i32 to vector<8x128xi32>
    %74 = arith.cmpi eq, %58, %73 : vector<8x128xi32>
    %cst_26 = arith.constant 0.000000e+00 : f32
    %75 = vector.shape_cast %57 : vector<1x1xf32> to vector<1x1xf32>
    %76 = vector.broadcast %75 : vector<1x1xf32> to vector<8x128xf32>
    %77 = vector.broadcast %cst_26 : f32 to vector<8x128xf32>
    %78 = arith.select %74, %76, %77 : vector<8x128xi1>, vector<8x128xf32>
    %79 = arith.addf %72, %78 : vector<8x128xf32>
    %80 = arith.addf %59, %79 : vector<8x128xf32>
    %c0_27 = arith.constant 0 : index
    %c0_28 = arith.constant 0 : index
    %81 = vector.load %arg7[%c0_27, %c0_28] : memref<8x128xf32, #tpu.memory_space<vmem>>, vector<8x128xf32>
    tpu.vector_store %arg7[%c0_27, %c0_28], %80 {strides = array<i32>} : memref<8x128xf32, #tpu.memory_space<vmem>>, vector<8x128xf32>,
    %c1_i32_29 = arith.constant 1 : i32
    %82 = arith.cmpi eq, %arg1, %c1_i32_29 : i32
    %83 = arith.extui %82 : i1 to i32
    %c0_i32_30 = arith.constant 0 : i32
    %84 = arith.cmpi ne, %83, %c0_i32_30 : i32
    scf.if %84 {
      %c0_31 = arith.constant 0 : index
      %c0_32 = arith.constant 0 : index
      %85 = vector.load %arg7[%c0_31, %c0_32] : memref<8x128xf32, #tpu.memory_space<vmem>>, vector<8x128xf32>
      %c0_33 = arith.constant 0 : index
      %c0_34 = arith.constant 0 : index
      %c0_35 = arith.constant 0 : index
      %86 = vector.load %arg6[%c0_33, %c0_34, %c0_35] : memref<1x8x128xf32, #tpu.memory_space<vmem>>, vector<1x8x128xf32>
      %87 = vector.shape_cast %86 : vector<1x8x128xf32> to vector<8x128xf32>
      %88 = vector.shape_cast %85 : vector<8x128xf32> to vector<1x8x128xf32>
      tpu.vector_store %arg6[%c0_33, %c0_34, %c0_35], %88 {strides = array<i32>} : memref<1x8x128xf32, #tpu.memory_space<vmem>>, vector<1x8x128xf32>,
    } else {
    }
    return
  }
  func.func @transform_0(%arg0: i32, %arg1: i32) -> (i32, i32) {
    %c0_i32 = arith.constant 0 : i32
    %c0_i32_0 = arith.constant 0 : i32
    %c0_i32_1 = arith.constant 0 : i32
    return %c0_i32, %c0_i32_0 : i32, i32
  }
  func.func @transform_1(%arg0: i32, %arg1: i32) -> (i32, i32) {
    %c0_i32 = arith.constant 0 : i32
    %c0_i32_0 = arith.constant 0 : i32
    %c0_i32_1 = arith.constant 0 : i32
    return %c0_i32, %c0_i32_0 : i32, i32
  }
  func.func @transform_2(%arg0: i32, %arg1: i32) -> (i32, i32) {
    %c2_i32 = arith.constant 2 : i32
    %0 = arith.muli %arg0, %c2_i32 : i32
    %1 = arith.addi %0, %arg1 : i32
    %c3_i32 = arith.constant 3 : i32
    %2 = arith.minsi %1, %c3_i32 : i32
    %c0_i32 = arith.constant 0 : i32
    %c0_i32_0 = arith.constant 0 : i32
    return %c0_i32, %2 : i32, i32
  }
  func.func @transform_3(%arg0: i32, %arg1: i32) -> (i32, i32) {
    %c2_i32 = arith.constant 2 : i32
    %0 = arith.muli %arg0, %c2_i32 : i32
    %1 = arith.addi %0, %arg1 : i32
    %c3_i32 = arith.constant 3 : i32
    %2 = arith.minsi %1, %c3_i32 : i32
    %c0_i32 = arith.constant 0 : i32
    %c0_i32_0 = arith.constant 0 : i32
    return %c0_i32, %2 : i32, i32
  }
  func.func @transform_4(%arg0: i32, %arg1: i32) -> (i32, i32, i32) {
    %c0_i32 = arith.constant 0 : i32
    %c0_i32_0 = arith.constant 0 : i32
    %c0_i32_1 = arith.constant 0 : i32
    return %arg0, %c0_i32, %c0_i32_0 : i32, i32, i32
  }
}

</mosaic_0001>

<llo_original>
// kernel: hashnet_loss.1
$region0: #{hashnet_loss.1}
  #allocation0 [shape = 'u32[]', space=smem, size = 0x4, offset = 0x4, fixed_abs, tag = 'smem constant byte address 0x4 - core index']
  #allocation1 [shape = 'u32[144,128]{1,0:T(1,128)}', space=vmem, size = 0x12000, scoped, tag = 'internal scratch']
  #allocation2 [shape = 'f32[8,128]{1,0:T(8,128)}', space=vmem, size = 0x1000, scoped, tag = 'scratch operand']
  %s0 = inlined_call_operand.vmem [shape: f32[8,32], index: 0, kind: input, shape index: {}]
  %s1 = inlined_call_operand.vmem [shape: f32[8,16], index: 1, kind: input, shape index: {}]
  %s2 = inlined_call_operand.vmem [shape: f32[32,1000], index: 2, kind: input, shape index: {}]
  %s3 = inlined_call_operand.vmem [shape: f32[16,1000], index: 3, kind: input, shape index: {}]
  %s4 = inlined_call_operand.vmem [shape: f32[2,8,128], index: 4, kind: output, shape index: {}]
  %s5 = sld [smem:[#allocation0]]
  $region103: #{hashnet_loss.1} parent=0
    _
  %s7 = ssub.s32 1, %s5
  %s8 = scalar_select 0, %s7, %s5
  $region1: #{hashnet_loss.1} parent=0
    #allocation3 [shape = 'u8[65536]{0}', space=vmem, size = 0x10000, scoped, tag = 'input window, operand 2']
    #allocation4 [shape = 'u8[32768]{0}', space=vmem, size = 0x8000, scoped, tag = 'input window, operand 3']
    loop: start=0, step=1, limit=6
    $region2: #{hashnet_loss.1} parent=1 // loop_pre_header
      _
    $region3: #{hashnet_loss.1} parent=1 // loop_header
      %s10 = sphi 0, %s14
      %p11 = scmp.ge.s32.totalorder %s10, 6
      %s17 = sphi 0, %s29
      %s18 = sphi 0, %s25
      %s19 = sphi 0, %s17
      %s20 = sphi 0, %s18
      %s21 = sphi 0, %s19
      %s22 = sphi 0, %s20
      %s30 = sphi 0, %s30
      %s32 = sphi 0, %s30
      %s33 = sphi 0, %s32
      %s47 = sphi 0, %s33
      %s51 = sphi 0, %s51
      %s53 = sphi 0, %s51
      %s54 = sphi 0, %s53
      %s68 = sphi 0, %s54
      %s82 = sphi 0, %s84
      %s85 = sphi 0, %s82
      %s86 = sphi 0, %s85
      %s102 = sphi 0, %s86
      %s116 = sphi 0, %s118
      %s119 = sphi 0, %s116
      %s120 = sphi 0, %s119
      %s136 = sphi 0, %s120
      %s142 = sphi 0, %s144
      %s145 = sphi 0, %s142
      %s146 = sphi 0, %s145
      %s162 = sphi 0, %s146
    $region4: #{hashnet_loss.1} parent=1 // loop_header_branch
      %13 = sbr.rel (%p11) target = $region8
    $region5: #{hashnet_loss.1} parent=1 // loop_body
      %s15 = ssub.s32 %s10, 1
      %s16 = ssub.s32 %s10, 2
      %s23 = sadd.s32 1, %s18
      %p24 = scmp.ge.s32.totalorder %s23, 2
      %s25 = scalar_select %p24, 0, %s23
      %s26 = sadd.s32 1, %s17
      %s27 = scalar_select %p24, %s26, %s17
      %p28 = scmp.ge.s32.totalorder %s27, 2
      %s29 = scalar_select %p28, 0, %s27
      %s31 = sadd.s32 %s30, 1
      %p34 = scmp.eq.s32.totalorder %s10, 3
      %p35 = scmp.ne.s32.totalorder %s30, %s32
      %p36 = scmp.eq.s32.totalorder %s10, 0
      %p37 = por %p35, %p36
      %p38 = scmp.ne.s32.totalorder %s30, %s32
      %p39 = scmp.eq.s32.totalorder %s15, 3
      %p40 = por %p38, %p39
      %p41 = scmp.ne.s32.totalorder %s32, %s33
      %p42 = scmp.eq.s32.totalorder %s15, 0
      %p43 = por %p41, %p42
      %p44 = scmp.ne.s32.totalorder %s32, %s33
      %p45 = scmp.eq.s32.totalorder %s16, 3
      %p46 = por %p44, %p45
      %p48 = scmp.ne.s32.totalorder %s33, %s47
      %p49 = scmp.eq.s32.totalorder %s16, 0
      %p50 = por %p48, %p49
      %s52 = sadd.s32 %s51, 1
      %p55 = scmp.eq.s32.totalorder %s10, 3
      %p56 = scmp.ne.s32.totalorder %s51, %s53
      %p57 = scmp.eq.s32.totalorder %s10, 0
      %p58 = por %p56, %p57
      %p59 = scmp.ne.s32.totalorder %s51, %s53
      %p60 = scmp.eq.s32.totalorder %s15, 3
      %p61 = por %p59, %p60
      %p62 = scmp.ne.s32.totalorder %s53, %s54
      %p63 = scmp.eq.s32.totalorder %s15, 0
      %p64 = por %p62, %p63
      %p65 = scmp.ne.s32.totalorder %s53, %s54
      %p66 = scmp.eq.s32.totalorder %s16, 3
      %p67 = por %p65, %p66
      %p69 = scmp.ne.s32.totalorder %s54, %s68
      %p70 = scmp.eq.s32.totalorder %s16, 0
      %p71 = por %p69, %p70
      %s72 = smul.u32 %s17, 2
      %s73 = sadd.s32 %s72, %s18
      %p74 = scmp.lt.s32.totalorder %s73, 3
      %s75 = scalar_select %p74, %s73, 3
      %s76 = smul.u32 %s29, 2
      %s77 = sadd.s32 %s76, %s25
      %p78 = scmp.lt.s32.totalorder %s77, 3
      %s79 = scalar_select %p78, %s77, 3
      %s80 = ssub.s32 %s75, %s79
      %p81 = scmp.eq.s32.totalorder %s80, 0
      %s83 = sadd.s32 %s82, 1
      %s84 = scalar_select %p81, %s82, %s83
      %p87 = pneg %p81
      %p88 = scmp.eq.s32.totalorder %s10, 3
      %p89 = por %p87, %p88
      %p90 = scmp.ne.s32.totalorder %s82, %s85
      %p91 = scmp.eq.s32.totalorder %s10, 0
      %p92 = por %p90, %p91
      %p93 = scmp.ne.s32.totalorder %s82, %s85
      %p94 = scmp.eq.s32.totalorder %s15, 3
      %p95 = por %p93, %p94
      %p96 = scmp.ne.s32.totalorder %s85, %s86
      %p97 = scmp.eq.s32.totalorder %s15, 0
      %p98 = por %p96, %p97
      %p99 = scmp.ne.s32.totalorder %s85, %s86
      %p100 = scmp.eq.s32.totalorder %s16, 3
      %p101 = por %p99, %p100
      %p103 = scmp.ne.s32.totalorder %s86, %s102
      %p104 = scmp.eq.s32.totalorder %s16, 0
      %p105 = por %p103, %p104
      %s106 = smul.u32 %s17, 2
      %s107 = sadd.s32 %s106, %s18
      %p108 = scmp.lt.s32.totalorder %s107, 3
      %s109 = scalar_select %p108, %s107, 3
      %s110 = smul.u32 %s29, 2
      %s111 = sadd.s32 %s110, %s25
      %p112 = scmp.lt.s32.totalorder %s111, 3
      %s113 = scalar_select %p112, %s111, 3
      %s114 = ssub.s32 %s109, %s113
      %p115 = scmp.eq.s32.totalorder %s114, 0
      %s117 = sadd.s32 %s116, 1
      %s118 = scalar_select %p115, %s116, %s117
      %p121 = pneg %p115
      %p122 = scmp.eq.s32.totalorder %s10, 3
      %p123 = por %p121, %p122
      %p124 = scmp.ne.s32.totalorder %s116, %s119
      %p125 = scmp.eq.s32.totalorder %s10, 0
      %p126 = por %p124, %p125
      %p127 = scmp.ne.s32.totalorder %s116, %s119
      %p128 = scmp.eq.s32.totalorder %s15, 3
      %p129 = por %p127, %p128
      %p130 = scmp.ne.s32.totalorder %s119, %s120
      %p131 = scmp.eq.s32.totalorder %s15, 0
      %p132 = por %p130, %p131
      %p133 = scmp.ne.s32.totalorder %s119, %s120
      %p134 = scmp.eq.s32.totalorder %s16, 3
      %p135 = por %p133, %p134
      %p137 = scmp.ne.s32.totalorder %s120, %s136
      %p138 = scmp.eq.s32.totalorder %s16, 0
      %p139 = por %p137, %p138
      %s140 = ssub.s32 %s17, %s29
      %p141 = scmp.eq.s32.totalorder %s140, 0
      %s143 = sadd.s32 %s142, 1
      %s144 = scalar_select %p141, %s142, %s143
      %p147 = pneg %p141
      %p148 = scmp.eq.s32.totalorder %s10, 3
      %p149 = por %p147, %p148
      %p150 = scmp.ne.s32.totalorder %s142, %s145
      %p151 = scmp.eq.s32.totalorder %s10, 0
      %p152 = por %p150, %p151
      %p153 = scmp.ne.s32.totalorder %s142, %s145
      %p154 = scmp.eq.s32.totalorder %s15, 3
      %p155 = por %p153, %p154
      %p156 = scmp.ne.s32.totalorder %s145, %s146
      %p157 = scmp.eq.s32.totalorder %s15, 0
      %p158 = por %p156, %p157
      %p159 = scmp.ne.s32.totalorder %s145, %s146
      %p160 = scmp.eq.s32.totalorder %s16, 3
      %p161 = por %p159, %p160
      %p163 = scmp.ne.s32.totalorder %s146, %s162
      %p164 = scmp.eq.s32.totalorder %s16, 0
      %p165 = por %p163, %p164
      %p166 = scmp.le.s32.totalorder 1, %s10
      %p167 = scmp.lt.s32.totalorder %s10, 5
      %p168 = pnand %p166, %p167
      %p169 = pneg %p168
      // Predicated region
      $region9: #{hashnet_loss.1} parent=5 // pred_check
        _
      $region10: #{hashnet_loss.1} parent=5 // pred_check_branch
        %171 = sbr.rel (%p168) target = $region12
      $region11: #{hashnet_loss.1} parent=5 // pred_region
        %s172 = ssub.s32 %s10, 1
        // Predicated region
        $region13: #{hashnet_loss.1} parent=11 // pred_check
          %p173 = pneg %p43
        $region14: #{hashnet_loss.1} parent=11 // pred_check_branch
          %175 = sbr.rel (%p173) target = $region16
        $region15: #{hashnet_loss.1} parent=11 // pred_region
          _
        $region16: #{hashnet_loss.1} parent=11 // pred_fallthru
          _
        // Predicated region
        $region17: #{hashnet_loss.1} parent=11 // pred_check
          %p176 = pneg %p64
        $region18: #{hashnet_loss.1} parent=11 // pred_check_branch
          %178 = sbr.rel (%p176) target = $region20
        $region19: #{hashnet_loss.1} parent=11 // pred_region
          _
        $region20: #{hashnet_loss.1} parent=11 // pred_fallthru
          _
      $region12: #{hashnet_loss.1} parent=5 // pred_fallthru
        _
      %p179 = scmp.lt.s32.totalorder %s10, 4
      // Predicated region
      $region21: #{hashnet_loss.1} parent=5 // pred_check
        %p180 = pneg %p179
      $region22: #{hashnet_loss.1} parent=5 // pred_check_branch
        %182 = sbr.rel (%p180) target = $region24
      $region23: #{hashnet_loss.1} parent=5 // pred_region
        // Predicated region
        $region25: #{hashnet_loss.1} parent=23 // pred_check
          %p183 = pneg %p92
        $region26: #{hashnet_loss.1} parent=23 // pred_check_branch
          %185 = sbr.rel (%p183) target = $region28
        $region27: #{hashnet_loss.1} parent=23 // pred_region
          %s186 = sand.u32 %s82, 1
          %s187 = sand.u32 %s82, 1
          %s188 = smul.addr %s187, 64
          %s189 = scalar_lea.vmem [#allocation3], %s188
          %s190 = smul.u32 %s17, 2
          %s191 = sadd.s32 %s190, %s18
          %p192 = scmp.lt.s32.totalorder %s191, 3
          %s193 = scalar_select %p192, %s191, 3
          %s194 = smul.u32 2, %s193
          %s195 = smul.addr %s194, 8
          %s196 = scalar_lea.vmem %s2, %s195
          // Predicated region
          $region29: #{hashnet_loss.1} parent=27 // pred_check
            _
          $region30: #{hashnet_loss.1} parent=27 // pred_check_branch
            %198 = sbr.rel (0) target = $region32
          $region31: #{hashnet_loss.1} parent=27 // pred_region
            // Predicated region
            $region33: #{hashnet_loss.1} parent=31 // pred_check
              _
            $region34: #{hashnet_loss.1} parent=31 // pred_check_branch
              %200 = sbr.rel (0) target = $region36
            $region35: #{hashnet_loss.1} parent=31 // pred_region
              loop: start=0, step=1, limit=1
              $region37: #{hashnet_loss.1} parent=35 // loop_pre_header
                _
              $region38: #{hashnet_loss.1} parent=35 // loop_header
                %s202 = sphi 0, %s206
                %p203 = scmp.ge.s32.totalorder %s202, 1
                %s207 = sphi %s196, %s196
                %s208 = sphi %s189, %s189
              $region39: #{hashnet_loss.1} parent=35 // loop_header_branch
                %205 = sbr.rel (%p203) target = $region43
              $region40: #{hashnet_loss.1} parent=35 // loop_body
                %v209 = vld [vmem:[%s207] sm:$0xff]
                %210 = vst [vmem:[%s208] sm:$0xff] %v209
                %v211 = vld [vmem:[%s207 + $0x8] sm:$0xff]
                %212 = vst [vmem:[%s208 + $0x8] sm:$0xff] %v211
                %v213 = vld [vmem:[%s207 + $0x40] sm:$0xff]
                %214 = vst [vmem:[%s208 + $0x10] sm:$0xff] %v213
                %v215 = vld [vmem:[%s207 + $0x48] sm:$0xff]
                %216 = vst [vmem:[%s208 + $0x18] sm:$0xff] %v215
                %v217 = vld [vmem:[%s207 + $0x80] sm:$0xff]
                %218 = vst [vmem:[%s208 + $0x20] sm:$0xff] %v217
                %v219 = vld [vmem:[%s207 + $0x88] sm:$0xff]
                %220 = vst [vmem:[%s208 + $0x28] sm:$0xff] %v219
                %v221 = vld [vmem:[%s207 + $0xc0] sm:$0xff]
                %222 = vst [vmem:[%s208 + $0x30] sm:$0xff] %v221
                %v223 = vld [vmem:[%s207 + $0xc8] sm:$0xff]
                %224 = vst [vmem:[%s208 + $0x38] sm:$0xff] %v223
              $region41: #{hashnet_loss.1} parent=35 // loop_footer
                %s206 = sadd.s32 1, %s202
              $region42: #{hashnet_loss.1} parent=35 // loop_footer_branch
                %201 = sbr.rel target = $region38
              $region43: #{hashnet_loss.1} parent=35 // loop_exit
                _
            $region36: #{hashnet_loss.1} parent=31 // pred_fallthru
              _
            // Predicated region
            $region44: #{hashnet_loss.1} parent=31 // pred_check
              _
            $region45: #{hashnet_loss.1} parent=31 // pred_check_branch
              %226 = sbr.rel target = $region47
            $region46: #{hashnet_loss.1} parent=31 // pred_region
              _
            $region47: #{hashnet_loss.1} parent=31 // pred_fallthru
              _
          $region32: #{hashnet_loss.1} parent=27 // pred_fallthru
            _
          %227 = vnop
        $region28: #{hashnet_loss.1} parent=23 // pred_fallthru
          _
        // Predicated region
        $region48: #{hashnet_loss.1} parent=23 // pred_check
          %p228 = pneg %p126
        $region49: #{hashnet_loss.1} parent=23 // pred_check_branch
          %230 = sbr.rel (%p228) target = $region51
        $region50: #{hashnet_loss.1} parent=23 // pred_region
          %s231 = sand.u32 %s116, 1
          %s232 = sand.u32 %s116, 1
          %s233 = smul.addr %s232, 32
          %s234 = scalar_lea.vmem [#allocation4], %s233
          %s235 = smul.u32 %s17, 2
          %s236 = sadd.s32 %s235, %s18
          %p237 = scmp.lt.s32.totalorder %s236, 3
          %s238 = scalar_select %p237, %s236, 3
          %s239 = smul.u32 2, %s238
          %s240 = smul.addr %s239, 8
          %s241 = scalar_lea.vmem %s3, %s240
          // Predicated region
          $region52: #{hashnet_loss.1} parent=50 // pred_check
            _
          $region53: #{hashnet_loss.1} parent=50 // pred_check_branch
            %243 = sbr.rel (0) target = $region55
          $region54: #{hashnet_loss.1} parent=50 // pred_region
            // Predicated region
            $region56: #{hashnet_loss.1} parent=54 // pred_check
              _
            $region57: #{hashnet_loss.1} parent=54 // pred_check_branch
              %245 = sbr.rel (0) target = $region59
            $region58: #{hashnet_loss.1} parent=54 // pred_region
              loop: start=0, step=1, limit=1
              $region60: #{hashnet_loss.1} parent=58 // loop_pre_header
                _
              $region61: #{hashnet_loss.1} parent=58 // loop_header
                %s247 = sphi 0, %s251
                %p248 = scmp.ge.s32.totalorder %s247, 1
                %s252 = sphi %s241, %s241
                %s253 = sphi %s234, %s234
              $region62: #{hashnet_loss.1} parent=58 // loop_header_branch
                %250 = sbr.rel (%p248) target = $region66
              $region63: #{hashnet_loss.1} parent=58 // loop_body
                %v254 = vld [vmem:[%s252] sm:$0xff]
                %255 = vst [vmem:[%s253] sm:$0xff] %v254
                %v256 = vld [vmem:[%s252 + $0x8] sm:$0xff]
                %257 = vst [vmem:[%s253 + $0x8] sm:$0xff] %v256
                %v258 = vld [vmem:[%s252 + $0x40] sm:$0xff]
                %259 = vst [vmem:[%s253 + $0x10] sm:$0xff] %v258
                %v260 = vld [vmem:[%s252 + $0x48] sm:$0xff]
                %261 = vst [vmem:[%s253 + $0x18] sm:$0xff] %v260
              $region64: #{hashnet_loss.1} parent=58 // loop_footer
                %s251 = sadd.s32 1, %s247
              $region65: #{hashnet_loss.1} parent=58 // loop_footer_branch
                %246 = sbr.rel target = $region61
              $region66: #{hashnet_loss.1} parent=58 // loop_exit
                _
            $region59: #{hashnet_loss.1} parent=54 // pred_fallthru
              _
            // Predicated region
            $region67: #{hashnet_loss.1} parent=54 // pred_check
              _
            $region68: #{hashnet_loss.1} parent=54 // pred_check_branch
              %263 = sbr.rel target = $region70
            $region69: #{hashnet_loss.1} parent=54 // pred_region
              _
            $region70: #{hashnet_loss.1} parent=54 // pred_fallthru
              _
          $region55: #{hashnet_loss.1} parent=50 // pred_fallthru
            _
          %264 = vnop
        $region51: #{hashnet_loss.1} parent=23 // pred_fallthru
          _
      $region24: #{hashnet_loss.1} parent=5 // pred_fallthru
        _
      %p265 = scmp.le.s32.totalorder 1, %s10
      %p266 = scmp.lt.s32.totalorder %s10, 5
      %p267 = pnand %p265, %p266
      %p268 = pneg %p267
      // Predicated region
      $region71: #{hashnet_loss.1} parent=5 // pred_check
        _
      $region72: #{hashnet_loss.1} parent=5 // pred_check_branch
        %270 = sbr.rel (%p267) target = $region74
      $region73: #{hashnet_loss.1} parent=5 // pred_region
        %s271 = ssub.s32 %s10, 1
        %s272 = sand.u32 %s85, 1
        %s273 = sand.u32 %s85, 1
        %s274 = smul.addr %s273, 64
        %s275 = scalar_lea.vmem [#allocation3], %s274
        // Predicated region
        $region75: #{hashnet_loss.1} parent=73 // pred_check
          %p276 = pneg %p98
        $region76: #{hashnet_loss.1} parent=73 // pred_check_branch
          %278 = sbr.rel (%p276) target = $region78
        $region77: #{hashnet_loss.1} parent=73 // pred_region
          _
        $region78: #{hashnet_loss.1} parent=73 // pred_fallthru
          _
        %s279 = sand.u32 %s119, 1
        %s280 = sand.u32 %s119, 1
        %s281 = smul.addr %s280, 32
        %s282 = scalar_lea.vmem [#allocation4], %s281
        // Predicated region
        $region79: #{hashnet_loss.1} parent=73 // pred_check
          %p283 = pneg %p132
        $region80: #{hashnet_loss.1} parent=73 // pred_check_branch
          %285 = sbr.rel (%p283) target = $region82
        $region81: #{hashnet_loss.1} parent=73 // pred_region
          _
        $region82: #{hashnet_loss.1} parent=73 // pred_fallthru
          _
        %p286 = pneg %p43
        %p287 = pneg %p40
        %p288 = pneg %p64
        %p289 = pneg %p61
        %s290 = sand.u32 %s85, 1
        %s291 = sand.u32 %s85, 1
        %s292 = smul.addr %s291, 64
        %s293 = scalar_lea.vmem [#allocation3], %s292
        %p294 = pneg %p98
        %p295 = pneg %p95
        %s296 = sand.u32 %s119, 1
        %s297 = sand.u32 %s119, 1
        %s298 = smul.addr %s297, 32
        %s299 = scalar_lea.vmem [#allocation4], %s298
        %p300 = pneg %p132
        %p301 = pneg %p129
        %p302 = pneg %p158
        %p303 = pneg %p155
        %p304 = scmp.lt.s32.totalorder %s19, 1
        %s305 = scalar_select %p304, %s19, 1
        %s306 = smul.addr %s305, 8
        %s307 = scalar_lea.vmem %s4, %s306
        %s308 = smul.u32 %s19, 2
        %s309 = sadd.s32 %s308, %s20
        %p310 = scmp.lt.s32.totalorder %s309, 3
        %s311 = scalar_select %p310, %s309, 3
        %s312 = smul.u32 2, %s311
        %s313 = smul.u32 %s19, 2
        %s314 = sadd.s32 %s313, %s20
        %p315 = scmp.lt.s32.totalorder %s314, 3
        %s316 = scalar_select %p315, %s314, 3
        %s317 = smul.u32 2, %s316
        %p318 = scmp.lt.s32.totalorder %s19, 1
        %s319 = scalar_select %p318, %s19, 1
        %s320 = smul.addr %s319, 8
        %s321 = scalar_lea.vmem %s4, %s320
        %p322 = scmp.eq.s32.totalorder %s20, 0
        // Predicated region
        $region83: #{hashnet_loss.1} parent=73 // pred_check
          %p323 = pneg %p322
        $region84: #{hashnet_loss.1} parent=73 // pred_check_branch
          %325 = sbr.rel (%p323) target = $region86
        $region85: #{hashnet_loss.1} parent=73 // pred_region
          %326 = vst [vmem:[#allocation2] sm:$0xff] 0.0
        $region86: #{hashnet_loss.1} parent=73 // pred_fallthru
          _
        %v327 = vld [vmem:[%s0] sm:$0xff]
        %v328 = vld [vmem:[%s1] sm:$0xff]
        %v329 = vld [vmem:[%s275] sm:$0xff]
        %v330 = vld [vmem:[%s275 + $0x8] sm:$0xff]
        %v331 = vld [vmem:[%s275 + $0x10] sm:$0xff]
        %v332 = vld [vmem:[%s275 + $0x18] sm:$0xff]
        %v333 = vld [vmem:[%s275 + $0x20] sm:$0xff]
        %v334 = vld [vmem:[%s275 + $0x28] sm:$0xff]
        %v335 = vld [vmem:[%s275 + $0x30] sm:$0xff]
        %v336 = vld [vmem:[%s275 + $0x38] sm:$0xff]
        %v337 = vld [vmem:[%s282] sm:$0xff]
        %v338 = vld [vmem:[%s282 + $0x8] sm:$0xff]
        %v339 = vld [vmem:[%s282 + $0x10] sm:$0xff]
        %v340 = vld [vmem:[%s282 + $0x18] sm:$0xff]
        %vm341 = vcmask 261120
        %v343 = vsel %vm341, %v327, 0
        %345 = vmatprep.subr.mxu0 0.0
        %346 = vmatpush1.msra.mxu0 0.0
        %347 = vmatprep.subr.mxu0 0.0
        %348 = vmatpush1.msra.mxu0 0.0
        %349 = vmatprep.subr.mxu0 0.0
        %350 = vmatpush1.msra.mxu0 0.0
        %351 = vmatprep.subr.mxu0 0.0
        %352 = vmatpush1.msra.mxu0 0.0
        %353 = vmatprep.subr.mxu0 0.0
        %354 = vmatpush1.msra.mxu0 0.0
        %355 = vmatprep.subr.mxu0 0.0
        %356 = vmatpush1.msra.mxu0 0.0
        %357 = vmatprep.subr.mxu0 0.0
        %358 = vmatpush1.msra.mxu0 0.0
        %359 = vmatprep.subr.mxu0 0.0
        %360 = vmatpush1.msra.mxu0 0.0
        %361 = vmatprep.subr.mxu0 0.0
        %362 = vmatpush1.msra.mxu0 0.0
        %363 = vmatprep.subr.mxu0 0.0
        %364 = vmatpush1.msra.mxu0 0.0
        %365 = vmatprep.subr.mxu0 0.0
        %366 = vmatpush1.msra.mxu0 0.0
        %367 = vmatprep.subr.mxu0 0.0
        %368 = vmatpush1.msra.mxu0 0.0
        %369 = vmatprep.subr.mxu0 %v336
        %370 = vmatpush1.msra.mxu0 %v335
        %371 = vmatprep.subr.mxu0 %v334
        %372 = vmatpush1.msra.mxu0 %v333
        %373 = vmatprep.subr.mxu0 %v332
        %374 = vmatpush1.msra.mxu0 %v331
        %375 = vmatprep.subr.mxu0 %v330
        %376 = vmatpush1.msra.mxu0 %v329
        %377 = vmatprep.subr.mxu0 0.0
        %378 = vmatpush2.msra.mxu0 0.0
        %379 = vmatprep.subr.mxu0 0.0
        %380 = vmatpush2.msra.mxu0 0.0
        %381 = vmatprep.subr.mxu0 0.0
        %382 = vmatpush2.msra.mxu0 0.0
        %383 = vmatprep.subr.mxu0 0.0
        %384 = vmatpush2.msra.mxu0 0.0
        %385 = vmatprep.subr.mxu0 0.0
        %386 = vmatpush2.msra.mxu0 0.0
        %387 = vmatprep.subr.mxu0 0.0
        %388 = vmatpush2.msra.mxu0 0.0
        %389 = vmatprep.subr.mxu0 0.0
        %390 = vmatpush2.msra.mxu0 0.0
        %391 = vmatprep.subr.mxu0 0.0
        %392 = vmatpush2.msra.mxu0 0.0
        %393 = vmatprep.subr.mxu0 0.0
        %394 = vmatpush2.msra.mxu0 0.0
        %395 = vmatprep.subr.mxu0 0.0
        %396 = vmatpush2.msra.mxu0 0.0
        %397 = vmatprep.subr.mxu0 0.0
        %398 = vmatpush2.msra.mxu0 0.0
        %399 = vmatprep.subr.mxu0 0.0
        %400 = vmatpush2.msra.mxu0 0.0
        %401 = vmatprep.subr.mxu0 0.0
        %402 = vmatpush2.msra.mxu0 0.0
        %403 = vmatprep.subr.mxu0 0.0
        %404 = vmatpush2.msra.mxu0 0.0
        %405 = vmatprep.subr.mxu0 0.0
        %406 = vmatpush2.msra.mxu0 0.0
        %407 = vmatprep.subr.mxu0 0.0
        %408 = vmatpush2.msra.mxu0 0.0
        %409 = vmatprep.mubr.f32.mxu0 0.0
        %410 = vmatmul.mubr.f32.gmra.mxu0 %v343
        %v411 = vpop.f32.mrf.mxu0
        %v412 = vadd.f32 0.0, %v411
        %v413 = vpop.f32.mrf.mxu0
        %v414 = vadd.f32 0.0, %v413
        %415 = vdwg.mxu0
        %v416 = vmul.f32 %v412, 0.1
        %v417 = vmul.f32 %v414, 0.1
        %vm418 = vcmask 130048
        %v420 = vsel %vm418, %v328, 0
        %422 = vmatprep.subr.mxu0 0.0
        %423 = vmatpush1.msra.mxu0 0.0
        %424 = vmatprep.subr.mxu0 0.0
        %425 = vmatpush1.msra.mxu0 0.0
        %426 = vmatprep.subr.mxu0 0.0
        %427 = vmatpush1.msra.mxu0 0.0
        %428 = vmatprep.subr.mxu0 0.0
        %429 = vmatpush1.msra.mxu0 0.0
        %430 = vmatprep.subr.mxu0 0.0
        %431 = vmatpush1.msra.mxu0 0.0
        %432 = vmatprep.subr.mxu0 0.0
        %433 = vmatpush1.msra.mxu0 0.0
        %434 = vmatprep.subr.mxu0 0.0
        %435 = vmatpush1.msra.mxu0 0.0
        %436 = vmatprep.subr.mxu0 0.0
        %437 = vmatpush1.msra.mxu0 0.0
        %438 = vmatprep.subr.mxu0 0.0
        %439 = vmatpush1.msra.mxu0 0.0
        %440 = vmatprep.subr.mxu0 0.0
        %441 = vmatpush1.msra.mxu0 0.0
        %442 = vmatprep.subr.mxu0 0.0
        %443 = vmatpush1.msra.mxu0 0.0
        %444 = vmatprep.subr.mxu0 0.0
        %445 = vmatpush1.msra.mxu0 0.0
        %446 = vmatprep.subr.mxu0 0.0
        %447 = vmatpush1.msra.mxu0 0.0
        %448 = vmatprep.subr.mxu0 0.0
        %449 = vmatpush1.msra.mxu0 0.0
        %450 = vmatprep.subr.mxu0 %v340
        %451 = vmatpush1.msra.mxu0 %v339
        %452 = vmatprep.subr.mxu0 %v338
        %453 = vmatpush1.msra.mxu0 %v337
        %454 = vmatprep.subr.mxu0 0.0
        %455 = vmatpush2.msra.mxu0 0.0
        %456 = vmatprep.subr.mxu0 0.0
        %457 = vmatpush2.msra.mxu0 0.0
        %458 = vmatprep.subr.mxu0 0.0
        %459 = vmatpush2.msra.mxu0 0.0
        %460 = vmatprep.subr.mxu0 0.0
        %461 = vmatpush2.msra.mxu0 0.0
        %462 = vmatprep.subr.mxu0 0.0
        %463 = vmatpush2.msra.mxu0 0.0
        %464 = vmatprep.subr.mxu0 0.0
        %465 = vmatpush2.msra.mxu0 0.0
        %466 = vmatprep.subr.mxu0 0.0
        %467 = vmatpush2.msra.mxu0 0.0
        %468 = vmatprep.subr.mxu0 0.0
        %469 = vmatpush2.msra.mxu0 0.0
        %470 = vmatprep.subr.mxu0 0.0
        %471 = vmatpush2.msra.mxu0 0.0
        %472 = vmatprep.subr.mxu0 0.0
        %473 = vmatpush2.msra.mxu0 0.0
        %474 = vmatprep.subr.mxu0 0.0
        %475 = vmatpush2.msra.mxu0 0.0
        %476 = vmatprep.subr.mxu0 0.0
        %477 = vmatpush2.msra.mxu0 0.0
        %478 = vmatprep.subr.mxu0 0.0
        %479 = vmatpush2.msra.mxu0 0.0
        %480 = vmatprep.subr.mxu0 0.0
        %481 = vmatpush2.msra.mxu0 0.0
        %482 = vmatprep.subr.mxu0 0.0
        %483 = vmatpush2.msra.mxu0 0.0
        %484 = vmatprep.subr.mxu0 0.0
        %485 = vmatpush2.msra.mxu0 0.0
        %486 = vmatprep.mubr.f32.mxu0 0.0
        %487 = vmatmul.mubr.f32.gmra.mxu0 %v420
        %v488 = vpop.f32.mrf.mxu0
        %v489 = vadd.f32 0.0, %v488
        %v490 = vpop.f32.mrf.mxu0
        %v491 = vadd.f32 0.0, %v490
        %492 = vdwg.mxu0
        %vm493 = vcmp.gt.f32.partialorder %v489, 0.0
        %vm494 = vcmp.gt.f32.partialorder %v491, 0.0
        %s495 = smul.u32 %s19, 2
        %s496 = sadd.s32 %s495, %s20
        %s497 = smul.u32 %s496, 256
        %v498 = vlaneseq
        %v499 = vand.u32 %v498, 127
        %v500 = vadd.s32 %v499, 128
        %v501 = vstv %s497
        %v502 = vadd.s32 %v501, %v499
        %v503 = vadd.s32 %v501, %v500
        %vm504 = vcmp.lt.s32.totalorder %v502, 1000
        %vm505 = vcmp.lt.s32.totalorder %v503, 1000
        %v506 = vsel %vm504, %v416, 0.0
        %v507 = vsel %vm505, %v417, 0.0
        %vm508 = vmand %vm504, %vm493
        %vm509 = vmand %vm505, %vm494
        %v510 = vsel %vm508, 1.0, 0.0
        %v511 = vsel %vm509, 1.0, 0.0
        %v512 = vsel %vm504, 1, 0
        %v513 = vsel %vm505, 1, 0
        %v514 = vcvt.s32.f32 %v512
        %v515 = vcvt.s32.f32 %v513
        %v516 = vand.u32 2147483647, %v506
        %v517 = vand.u32 2147483647, %v507
        %v518 = vsub.f32 0.0, %v516
        %v519 = vsub.f32 0.0, %v517
        %v520 = vmul.f32 %v518, 1.442695
        %v521 = vpow.pop %v520
        %v522 = vmul.f32 %v519, 1.442695
        %v523 = vpow.pop %v522
        %v524 = vadd.f32 %v521, 1.0
        %v525 = vadd.f32 %v523, 1.0
        %v526 = vlog2.pop %v524
        %v527 = vmul.f32 %v526, 0.6931472
        %v528 = vlog2.pop %v525
        %v529 = vmul.f32 %v528, 0.6931472
        %v530 = vmax.f32 %v506, 0.0
        %v531 = vmax.f32 %v507, 0.0
        %v532 = vadd.f32 %v527, %v530
        %v533 = vadd.f32 %v529, %v531
        %v534 = vmul.f32 %v510, %v506
        %v535 = vmul.f32 %v511, %v507
        %v536 = vsub.f32 %v532, %v534
        %v537 = vsub.f32 %v533, %v535
        %v538 = vmul.f32 %v536, %v514
        %v539 = vmul.f32 %v537, %v515
        %v540 = vadd.f32 %v538, %v539
        %541 = vadd.xlane.f32.xlu0 %v540
        %v542 = vpop.xlane.xlu0 %541
        %v543 = vrot.slane %v542, 4
        %v544 = vadd.f32 %v542, %v543
        %v545 = vrot.slane %v544, 2
        %v546 = vadd.f32 %v544, %v545
        %v547 = vrot.slane %v546, 1
        %v548 = vadd.f32 %v546, %v547
        %s549 = vtos %v548
        %v550 = vmul.f32 %v536, %v510
        %v551 = vmul.f32 %v537, %v511
        %v552 = vadd.f32 %v550, %v551
        %553 = vadd.xlane.f32.xlu0 %v552
        %v554 = vpop.xlane.xlu0 %553
        %v555 = vrot.slane %v554, 4
        %v556 = vadd.f32 %v554, %v555
        %v557 = vrot.slane %v556, 2
        %v558 = vadd.f32 %v556, %v557
        %v559 = vrot.slane %v558, 1
        %v560 = vadd.f32 %v558, %v559
        %s561 = vtos %v560
        %v562 = vadd.f32 %v510, %v511
        %563 = vadd.xlane.f32.xlu0 %v562
        %v564 = vpop.xlane.xlu0 %563
        %v565 = vrot.slane %v564, 4
        %v566 = vadd.f32 %v564, %v565
        %v567 = vrot.slane %v566, 2
        %v568 = vadd.f32 %v566, %v567
        %v569 = vrot.slane %v568, 1
        %v570 = vadd.f32 %v568, %v569
        %s571 = vtos %v570
        %v572 = vld [vmem:[#allocation2] sm:$0xff]
        %vm573 = vcmp.eq.s32.totalorder %v499, 0
        %v574 = vstv %s549
        %v575 = vsel %vm573, %v574, 0.0
        %vm576 = vcmp.eq.s32.totalorder %v499, 1
        %v577 = vstv %s561
        %v578 = vsel %vm576, %v577, 0.0
        %v579 = vadd.f32 %v575, %v578
        %vm580 = vcmp.eq.s32.totalorder %v499, 2
        %v581 = vstv %s571
        %v582 = vsel %vm580, %v581, 0.0
        %v583 = vadd.f32 %v579, %v582
        %v584 = vadd.f32 %v572, %v583
        %585 = vst [vmem:[#allocation2] sm:$0xff] %v584
        %p586 = scmp.eq.s32.totalorder %s20, 1
        // Predicated region
        $region87: #{hashnet_loss.1} parent=73 // pred_check
          %p587 = pneg %p586
        $region88: #{hashnet_loss.1} parent=73 // pred_check_branch
          %589 = sbr.rel (%p587) target = $region90
        $region89: #{hashnet_loss.1} parent=73 // pred_region
          %v590 = vld [vmem:[#allocation2] sm:$0xff]
          %591 = vst [vmem:[%s321] sm:$0xff] %v590
        $region90: #{hashnet_loss.1} parent=73 // pred_fallthru
          _
        %p592 = scmp.lt.s32.totalorder %s19, 1
        %s593 = scalar_select %p592, %s19, 1
        %s594 = smul.addr %s593, 8
        %s595 = scalar_lea.vmem %s4, %s594
        // Predicated region
        $region91: #{hashnet_loss.1} parent=73 // pred_check
          %p596 = pneg %p155
        $region92: #{hashnet_loss.1} parent=73 // pred_check_branch
          %598 = sbr.rel (%p596) target = $region94
        $region93: #{hashnet_loss.1} parent=73 // pred_region
          _
        $region94: #{hashnet_loss.1} parent=73 // pred_fallthru
          _
      $region74: #{hashnet_loss.1} parent=5 // pred_fallthru
        _
      %p599 = scmp.le.s32.totalorder 2, %s10
      // Predicated region
      $region95: #{hashnet_loss.1} parent=5 // pred_check
        %p600 = pneg %p599
      $region96: #{hashnet_loss.1} parent=5 // pred_check_branch
        %602 = sbr.rel (%p600) target = $region98
      $region97: #{hashnet_loss.1} parent=5 // pred_region
        %s603 = ssub.s32 %s10, 2
        // Predicated region
        $region99: #{hashnet_loss.1} parent=97 // pred_check
          %p604 = pneg %p161
        $region100: #{hashnet_loss.1} parent=97 // pred_check_branch
          %606 = sbr.rel (%p604) target = $region102
        $region101: #{hashnet_loss.1} parent=97 // pred_region
          %p607 = scmp.lt.s32.totalorder %s21, 1
          %s608 = scalar_select %p607, %s21, 1
          %s609 = smul.addr %s608, 8
          %s610 = scalar_lea.vmem %s4, %s609
        $region102: #{hashnet_loss.1} parent=97 // pred_fallthru
          _
      $region98: #{hashnet_loss.1} parent=5 // pred_fallthru
        _
    $region6: #{hashnet_loss.1} parent=1 // loop_footer
      %s14 = sadd.s32 1, %s10
    $region7: #{hashnet_loss.1} parent=1 // loop_footer_branch
      %9 = sbr.rel target = $region3
    $region8: #{hashnet_loss.1} parent=1 // loop_exit
      _

</llo_original>
